<compile_context>
chip_gen: v7x
topology: tpu7x:2x2x1
jax: 0.10.0
libtpu: 0.0.40
codegen_flags: <defaults>
</compile_context>

<pallas_src>
import functools

import jax
import jax.numpy as jnp
from jax import lax
from jax.experimental import pallas as pl
from jax.experimental.pallas import tpu as pltpu

HEAD_PAD = 128  # lane-dense padded width of the fused (mean || var) head output


def _round_up(x, m):
    return (x + m - 1) // m * m


def _policy_trpo_kernel(x_ref,
                        w1_ref, b1_ref,
                        w2_ref, b2_ref,
                        w3_ref, b3_ref,
                        wh_ref, bh_ref,
                        out_ref, *, action_dim):
    """fc1->relu -> fc2->relu -> fc3->relu -> fused head (tanh-mean || softmax-std).

    Output is one lane-dense (TILE_B, 128) bf16 slab:
      cols [0, A)    -> tanh(mean logits)
      cols [A, 2A)   -> softmax(var logits)   (softmax over exactly the A var cols)
      cols [2A, 128) -> zeros (padding)
    """
    a = action_dim

    x = x_ref[...].astype(jnp.bfloat16)
    h1 = jnp.dot(x, w1_ref[...], preferred_element_type=jnp.float32) + b1_ref[...]
    h1 = jnp.maximum(h1, 0.0)

    h2 = jnp.dot(h1.astype(jnp.bfloat16), w2_ref[...],
                 preferred_element_type=jnp.float32) + b2_ref[...]
    h2 = jnp.maximum(h2, 0.0)

    h3 = jnp.dot(h2.astype(jnp.bfloat16), w3_ref[...],
                 preferred_element_type=jnp.float32) + b3_ref[...]
    h3 = jnp.maximum(h3, 0.0)

    # Fused (mean || var) head: a single full-lane (TILE_B,128)x(128,128) matmul.
    y = jnp.dot(h3.astype(jnp.bfloat16), wh_ref[...],
                preferred_element_type=jnp.float32) + bh_ref[...]

    col = lax.broadcasted_iota(jnp.int32, y.shape, 1)
    is_mean = col < a
    var_mask = (col >= a) & (col < 2 * a)

    # Stable-softmax max over exactly the A variance columns.
    m = jnp.max(jnp.where(var_mask, y, -jnp.inf), axis=-1, keepdims=True)

    # Single EUP exp pass serving both heads:
    #   mean cols: exp(2y)   -> tanh(y) = 1 - 2/(exp(2y)+1)
    #   var  cols: exp(y-m)  -> softmax numerator
    #   pad  cols: exp(-inf) = 0
    z = jnp.exp(jnp.where(is_mean, 2.0 * y,
                          jnp.where(var_mask, y - m, -jnp.inf)))

    mean_part = jnp.clip(1.0 - 2.0 * pl.reciprocal(z + 1.0, approx=True), -1.0, 1.0)
    denom = jnp.sum(jnp.where(var_mask, z, 0.0), axis=-1, keepdims=True)
    std_part = z * pl.reciprocal(denom, approx=True)   # zero at pad cols (z == 0)

    # Single unmasked, lane-dense bf16 store: mean || std || zeros.
    out_ref[...] = jnp.where(is_mean, mean_part, std_part).astype(out_ref.dtype)


def pack_params(params):
    """Pack/pad params into kernel-ready arrays.

    - fc3 output padded 64 -> 128 (zero cols); heads fused into one (128, 128)
      weight / (1, 128) bias (mean cols [0,A), var cols [A,2A), rest zero)
    - weights cast to bf16 (MXU operands, halves weight DMA); biases stay f32
    """
    (w1, b1, w2, b2, w3, b3, wm, bm, wv, bv) = params
    a = wm.shape[1]
    assert 2 * a <= HEAD_PAD, "action_dim too large for padded head"

    w3p = jnp.pad(w3, ((0, 0), (0, 128 - w3.shape[1])))
    b3p = jnp.pad(b3, ((0, 0), (0, 128 - b3.shape[1])))

    wh = jnp.zeros((128, HEAD_PAD), jnp.float32)
    wh = wh.at[: wm.shape[0], :a].set(wm)
    wh = wh.at[: wv.shape[0], a:2 * a].set(wv)
    bh = jnp.zeros((1, HEAD_PAD), jnp.float32)
    bh = bh.at[:, :a].set(bm)
    bh = bh.at[:, a:2 * a].set(bv)

    bf16 = lambda w: w.astype(jnp.bfloat16)
    return (bf16(w1), b1, bf16(w2), b2, bf16(w3p), b3p, bf16(wh), bh)


def _choose_batch_tiling(B):
    """Pick (tile_b, padded_B).

    - tiles sized from B (padding < 16 rows per tile), multiples of 16 (bf16
      output sublane packing)
    - tiles capped at 1024 rows: amortizes the ~0.35 us/step overhead on
      single-TC v5e/v6e while staying well under every generation's VMEM
    - when B is large enough to split, the step count is kept even (>= 2) so
      the 'parallel' batch axis load-balances across v7x's two TensorCores
    """
    MAX_TILE = 1024
    if B <= 256:
        tile_b = _round_up(max(B, 1), 16)
        return tile_b, tile_b
    n_tiles = _round_up(pl.cdiv(B, MAX_TILE), 2)
    tile_b = _round_up(pl.cdiv(B, n_tiles), 16)
    return tile_b, n_tiles * tile_b


@functools.partial(jax.jit, static_argnums=(2,))
def policy_trpo_forward(state, packed_params, action_dim):
    """One pallas_call, batch tiled over a 1-D 'parallel' grid, weights resident."""
    (w1, b1, w2, b2, w3, b3, wh, bh) = packed_params
    B, S = state.shape
    a = action_dim

    tile_b, bp = _choose_batch_tiling(B)
    if bp != B:
        state = jnp.pad(state, ((0, bp - B), (0, 0)))

    def resident(arr):
        nd = arr.ndim
        return pl.BlockSpec(arr.shape, lambda i, _n=nd: (0,) * _n)

    kernel = functools.partial(_policy_trpo_kernel, action_dim=a)

    out = pl.pallas_call(
        kernel,
        out_shape=jax.ShapeDtypeStruct((bp, HEAD_PAD), jnp.bfloat16),
        grid=(bp // tile_b,),
        in_specs=[
            pl.BlockSpec((tile_b, S), lambda i: (i, 0)),
            resident(w1), resident(b1),
            resident(w2), resident(b2),
            resident(w3), resident(b3),
            resident(wh), resident(bh),
        ],
        out_specs=pl.BlockSpec((tile_b, HEAD_PAD), lambda i: (i, 0)),
        compiler_params=pltpu.CompilerParams(
            dimension_semantics=("parallel",),
            vmem_limit_bytes=32 * 1024 * 1024),
    )(state, w1, b1, w2, b2, w3, b3, wh, bh)

    # Single narrow read of the live [0, 2A) columns; mean/std split + f32
    # upcast then operate on the small (B, 2A) array rather than the full slab.
    live = lax.slice(out, (0, 0), (B, 2 * a)).astype(jnp.float32)
    action_mean = live[:, :a]
    action_std = live[:, a:]
    return action_mean, action_std


# ----------------------- init + pure-JAX reference ---------------------------
def xavier_uniform(key, fan_in, fan_out):
    # matches torch.nn.init.xavier_uniform (gain=1): U(-a, a), a = sqrt(6/(fan_in+fan_out))
    a = jnp.sqrt(6.0 / (fan_in + fan_out))
    # weights stored as [in, out] (transposed relative to torch's [out, in])
    return jax.random.uniform(key, (fan_in, fan_out), jnp.float32, -a, a)


def make_params(key, state_dim, action_dim):
    ks = jax.random.split(key, 10)

    def bias(k, fan_in, out):
        bnd = 1.0 / jnp.sqrt(fan_in)
        return jax.random.uniform(k, (1, out), jnp.float32, -bnd, bnd)

    w1 = xavier_uniform(ks[0], state_dim, 256); b1 = bias(ks[1], state_dim, 256)
    w2 = xavier_uniform(ks[2], 256, 128);       b2 = bias(ks[3], 256, 128)
    w3 = xavier_uniform(ks[4], 128, 64);        b3 = bias(ks[5], 128, 64)
    wm = xavier_uniform(ks[6], 64, action_dim); bm = bias(ks[7], 64, action_dim)
    wv = xavier_uniform(ks[8], 64, action_dim); bv = bias(ks[9], 64, action_dim)
    return (w1, b1, w2, b2, w3, b3, wm, bm, wv, bv)


def policy_trpo_reference(state, params):
    """Pure-JAX reference mirroring the kernel's bf16-MXU / f32-accumulate numerics."""
    (w1, b1, w2, b2, w3, b3, wm, bm, wv, bv) = params
    bf = jnp.bfloat16

    def dot(x, w):
        return jnp.dot(x.astype(bf), w.astype(bf), preferred_element_type=jnp.float32)

    h1 = jnp.maximum(dot(state, w1) + b1, 0.0)
    h2 = jnp.maximum(dot(h1, w2) + b2, 0.0)
    h3 = jnp.maximum(dot(h2, w3) + b3, 0.0)
    mean = jnp.tanh(dot(h3, wm) + bm)
    std = jax.nn.softmax(dot(h3, wv) + bv, axis=-1)
    return mean, std


if __name__ == "__main__":
    state_dim, action_dim = 32, 8
    key = jax.random.PRNGKey(0)
    k_params, k_state1, k_state2 = jax.random.split(key, 3)

    params = make_params(k_params, state_dim, action_dim)
    packed = pack_params(params)

    # small batch (single grid step)
    state = jax.random.normal(k_state1, (8, state_dim), jnp.float32)
    action_mean, action_std = policy_trpo_forward(state, packed, action_dim)
    jax.block_until_ready((action_mean, action_std))

    assert action_mean.shape == (8, action_dim)
    assert action_std.shape == (8, action_dim)
    # bf16 output slab + approx reciprocals: slightly looser tolerances than f32
    assert jnp.allclose(jnp.sum(action_std, axis=-1), 1.0, atol=1e-2)
    assert jnp.all(jnp.abs(action_mean) <= 1.0)

    ref_mean, ref_std = policy_trpo_reference(state, params)
    assert jnp.allclose(action_mean, ref_mean, atol=2e-2)
    assert jnp.allclose(action_std, ref_std, atol=2e-2)

    # larger batch exercising batch tiling + padding (even grid >= 2)
    state_big = jax.random.normal(k_state2, (1000, state_dim), jnp.float32)
    mean_big, std_big = policy_trpo_forward(state_big, packed, action_dim)
    jax.block_until_ready((mean_big, std_big))
    assert mean_big.shape == (1000, action_dim)
    assert std_big.shape == (1000, action_dim)
    assert jnp.allclose(jnp.sum(std_big, axis=-1), 1.0, atol=1e-2)
    rm, rs = policy_trpo_reference(state_big, params)
    assert jnp.allclose(mean_big, rm, atol=2e-2)
    assert jnp.allclose(std_big, rs, atol=2e-2)

    print("KERNEL_OK")
</pallas_src>

<mosaic_0001>
module attributes {stable_mosaic.version = 11 : i64} {
  func.func @_policy_trpo_kernel(%arg0: i32, %arg1: memref<16x32xf32, #tpu.memory_space<vmem>>, %arg2: memref<32x256xbf16, #tpu.memory_space<vmem>>, %arg3: memref<1x256xf32, #tpu.memory_space<vmem>>, %arg4: memref<256x128xbf16, #tpu.memory_space<vmem>>, %arg5: memref<1x128xf32, #tpu.memory_space<vmem>>, %arg6: memref<128x128xbf16, #tpu.memory_space<vmem>>, %arg7: memref<1x128xf32, #tpu.memory_space<vmem>>, %arg8: memref<128x128xbf16, #tpu.memory_space<vmem>>, %arg9: memref<1x128xf32, #tpu.memory_space<vmem>>, %arg10: memref<16x128xbf16, #tpu.memory_space<vmem>>) attributes {dimension_semantics = [#tpu.dimension_semantics<parallel>], iteration_bounds = array<i64: 1>, scalar_prefetch = 0 : i64, scratch_operands = 0 : i64, tpu.core_type = #tpu.core_type<tc>, window_params = [{transform_indices = @transform_0, window_bounds = array<i64: 16, 32>}, {pipeline_mode = #tpu.pipeline_mode<synchronous>, transform_indices = @transform_1, window_bounds = array<i64: 32, 256>}, {pipeline_mode = #tpu.pipeline_mode<synchronous>, transform_indices = @transform_2, window_bounds = array<i64: 1, 256>}, {pipeline_mode = #tpu.pipeline_mode<synchronous>, transform_indices = @transform_3, window_bounds = array<i64: 256, 128>}, {pipeline_mode = #tpu.pipeline_mode<synchronous>, transform_indices = @transform_4, window_bounds = array<i64: 1, 128>}, {pipeline_mode = #tpu.pipeline_mode<synchronous>, transform_indices = @transform_5, window_bounds = array<i64: 128, 128>}, {pipeline_mode = #tpu.pipeline_mode<synchronous>, transform_indices = @transform_6, window_bounds = array<i64: 1, 128>}, {pipeline_mode = #tpu.pipeline_mode<synchronous>, transform_indices = @transform_7, window_bounds = array<i64: 128, 128>}, {pipeline_mode = #tpu.pipeline_mode<synchronous>, transform_indices = @transform_8, window_bounds = array<i64: 1, 128>}, {transform_indices = @transform_9, window_bounds = array<i64: 16, 128>}]} {
    %c0 = arith.constant 0 : index
    %c0_0 = arith.constant 0 : index
    %0 = vector.load %arg1[%c0, %c0_0] : memref<16x32xf32, #tpu.memory_space<vmem>>, vector<16x32xf32>
    %1 = arith.truncf %0 : vector<16x32xf32> to vector<16x32xbf16>
    %c0_1 = arith.constant 0 : index
    %c0_2 = arith.constant 0 : index
    %2 = vector.load %arg2[%c0_1, %c0_2] : memref<32x256xbf16, #tpu.memory_space<vmem>>, vector<32x256xbf16>
    %cst = arith.constant dense<0.000000e+00> : vector<16x256xf32>
    %3 = tpu.matmul %1, %2, %cst {dimension_numbers = #tpu.dot_dimension_numbers<[1], [0], [0], [1], [0, 0, 1, 1], [], []>} : vector<16x32xbf16>, vector<32x256xbf16>, vector<16x256xf32> -> vector<16x256xf32>
    %c0_3 = arith.constant 0 : index
    %c0_4 = arith.constant 0 : index
    %4 = vector.load %arg3[%c0_3, %c0_4] : memref<1x256xf32, #tpu.memory_space<vmem>>, vector<1x256xf32>
    %5 = vector.broadcast %4 : vector<1x256xf32> to vector<16x256xf32>
    %6 = arith.addf %3, %5 : vector<16x256xf32>
    %cst_5 = arith.constant 0.000000e+00 : f32
    %7 = vector.broadcast %cst_5 : f32 to vector<16x256xf32>
    %8 = arith.maximumf %6, %7 : vector<16x256xf32>
    %9 = arith.truncf %8 : vector<16x256xf32> to vector<16x256xbf16>
    %c0_6 = arith.constant 0 : index
    %c0_7 = arith.constant 0 : index
    %10 = vector.load %arg4[%c0_6, %c0_7] : memref<256x128xbf16, #tpu.memory_space<vmem>>, vector<256x128xbf16>
    %cst_8 = arith.constant dense<0.000000e+00> : vector<16x128xf32>
    %11 = tpu.matmul %9, %10, %cst_8 {dimension_numbers = #tpu.dot_dimension_numbers<[1], [0], [0], [1], [0, 0, 1, 1], [], []>} : vector<16x256xbf16>, vector<256x128xbf16>, vector<16x128xf32> -> vector<16x128xf32>
    %c0_9 = arith.constant 0 : index
    %c0_10 = arith.constant 0 : index
    %12 = vector.load %arg5[%c0_9, %c0_10] : memref<1x128xf32, #tpu.memory_space<vmem>>, vector<1x128xf32>
    %13 = vector.broadcast %12 : vector<1x128xf32> to vector<16x128xf32>
    %14 = arith.addf %11, %13 : vector<16x128xf32>
    %cst_11 = arith.constant 0.000000e+00 : f32
    %15 = vector.broadcast %cst_11 : f32 to vector<16x128xf32>
    %16 = arith.maximumf %14, %15 : vector<16x128xf32>
    %17 = arith.truncf %16 : vector<16x128xf32> to vector<16x128xbf16>
    %c0_12 = arith.constant 0 : index
    %c0_13 = arith.constant 0 : index
    %18 = vector.load %arg6[%c0_12, %c0_13] : memref<128x128xbf16, #tpu.memory_space<vmem>>, vector<128x128xbf16>
    %cst_14 = arith.constant dense<0.000000e+00> : vector<16x128xf32>
    %19 = tpu.matmul %17, %18, %cst_14 {dimension_numbers = #tpu.dot_dimension_numbers<[1], [0], [0], [1], [0, 0, 1, 1], [], []>} : vector<16x128xbf16>, vector<128x128xbf16>, vector<16x128xf32> -> vector<16x128xf32>
    %c0_15 = arith.constant 0 : index
    %c0_16 = arith.constant 0 : index
    %20 = vector.load %arg7[%c0_15, %c0_16] : memref<1x128xf32, #tpu.memory_space<vmem>>, vector<1x128xf32>
    %21 = vector.broadcast %20 : vector<1x128xf32> to vector<16x128xf32>
    %22 = arith.addf %19, %21 : vector<16x128xf32>
    %cst_17 = arith.constant 0.000000e+00 : f32
    %23 = vector.broadcast %cst_17 : f32 to vector<16x128xf32>
    %24 = arith.maximumf %22, %23 : vector<16x128xf32>
    %25 = arith.truncf %24 : vector<16x128xf32> to vector<16x128xbf16>
    %c0_18 = arith.constant 0 : index
    %c0_19 = arith.constant 0 : index
    %26 = vector.load %arg8[%c0_18, %c0_19] : memref<128x128xbf16, #tpu.memory_space<vmem>>, vector<128x128xbf16>
    %cst_20 = arith.constant dense<0.000000e+00> : vector<16x128xf32>
    %27 = tpu.matmul %25, %26, %cst_20 {dimension_numbers = #tpu.dot_dimension_numbers<[1], [0], [0], [1], [0, 0, 1, 1], [], []>} : vector<16x128xbf16>, vector<128x128xbf16>, vector<16x128xf32> -> vector<16x128xf32>
    %c0_21 = arith.constant 0 : index
    %c0_22 = arith.constant 0 : index
    %28 = vector.load %arg9[%c0_21, %c0_22] : memref<1x128xf32, #tpu.memory_space<vmem>>, vector<1x128xf32>
    %29 = vector.broadcast %28 : vector<1x128xf32> to vector<16x128xf32>
    %30 = arith.addf %27, %29 : vector<16x128xf32>
    %31 = tpu.iota {dimensions = array<i32: 1>} : vector<16x128xi32>
    %c8_i32 = arith.constant 8 : i32
    %32 = vector.broadcast %c8_i32 : i32 to vector<16x128xi32>
    %33 = arith.cmpi slt, %31, %32 : vector<16x128xi32>
    %c8_i32_23 = arith.constant 8 : i32
    %34 = vector.broadcast %c8_i32_23 : i32 to vector<16x128xi32>
    %35 = arith.cmpi sge, %31, %34 : vector<16x128xi32>
    %c16_i32 = arith.constant 16 : i32
    %36 = vector.broadcast %c16_i32 : i32 to vector<16x128xi32>
    %37 = arith.cmpi slt, %31, %36 : vector<16x128xi32>
    %38 = arith.andi %35, %37 : vector<16x128xi1>
    %cst_24 = arith.constant 0xFF800000 : f32
    %39 = vector.broadcast %cst_24 : f32 to vector<16x128xf32>
    %40 = arith.select %38, %30, %39 : vector<16x128xi1>, vector<16x128xf32>
    %cst_25 = arith.constant dense<0xFF800000> : vector<16xf32>
    %41 = vector.multi_reduction <maximumf>, %40, %cst_25 [1] : vector<16x128xf32> to vector<16xf32>
    %42 = vector.shape_cast %41 : vector<16xf32> to vector<16x1xf32>
    %cst_26 = arith.constant 2.000000e+00 : f32
    %43 = vector.broadcast %cst_26 : f32 to vector<16x128xf32>
    %44 = arith.mulf %43, %30 : vector<16x128xf32>
    %45 = vector.broadcast %42 : vector<16x1xf32> to vector<16x128xf32>
    %46 = arith.subf %30, %45 : vector<16x128xf32>
    %cst_27 = arith.constant 0xFF800000 : f32
    %47 = vector.broadcast %cst_27 : f32 to vector<16x128xf32>
    %48 = arith.select %38, %46, %47 : vector<16x128xi1>, vector<16x128xf32>
    %49 = arith.select %33, %44, %48 : vector<16x128xi1>, vector<16x128xf32>
    %50 = math.exp %49 : vector<16x128xf32>
    %cst_28 = arith.constant 1.000000e+00 : f32
    %51 = vector.broadcast %cst_28 : f32 to vector<16x128xf32>
    %52 = arith.addf %50, %51 : vector<16x128xf32>
    %53 = tpu.reciprocal %52 {approx = true} : vector<16x128xf32> -> vector<16x128xf32>
    %cst_29 = arith.constant 2.000000e+00 : f32
    %54 = vector.broadcast %cst_29 : f32 to vector<16x128xf32>
    %55 = arith.mulf %54, %53 : vector<16x128xf32>
    %cst_30 = arith.constant 1.000000e+00 : f32
    %56 = vector.broadcast %cst_30 : f32 to vector<16x128xf32>
    %57 = arith.subf %56, %55 : vector<16x128xf32>
    %cst_31 = arith.constant -1.000000e+00 : f32
    %cst_32 = arith.constant 1.000000e+00 : f32
    %58 = vector.broadcast %cst_31 : f32 to vector<16x128xf32>
    %59 = arith.maximumf %58, %57 : vector<16x128xf32>
    %60 = vector.broadcast %cst_32 : f32 to vector<16x128xf32>
    %61 = arith.minimumf %60, %59 : vector<16x128xf32>
    %cst_33 = arith.constant 0.000000e+00 : f32
    %62 = vector.broadcast %cst_33 : f32 to vector<16x128xf32>
    %63 = arith.select %38, %50, %62 : vector<16x128xi1>, vector<16x128xf32>
    %cst_34 = arith.constant dense<0.000000e+00> : vector<16xf32>
    %64 = vector.multi_reduction <add>, %63, %cst_34 [1] : vector<16x128xf32> to vector<16xf32>
    %65 = vector.shape_cast %64 : vector<16xf32> to vector<16x1xf32>
    %66 = tpu.reciprocal %65 {approx = true} : vector<16x1xf32> -> vector<16x1xf32>
    %67 = vector.broadcast %66 : vector<16x1xf32> to vector<16x128xf32>
    %68 = arith.mulf %50, %67 : vector<16x128xf32>
    %69 = arith.select %33, %61, %68 : vector<16x128xi1>, vector<16x128xf32>
    %70 = arith.truncf %69 : vector<16x128xf32> to vector<16x128xbf16>
    %c0_35 = arith.constant 0 : index
    %c0_36 = arith.constant 0 : index
    %71 = vector.load %arg10[%c0_35, %c0_36] : memref<16x128xbf16, #tpu.memory_space<vmem>>, vector<16x128xbf16>
    tpu.vector_store %arg10[%c0_35, %c0_36], %70 {strides = array<i32>} : memref<16x128xbf16, #tpu.memory_space<vmem>>, vector<16x128xbf16>,
    return
  }
  func.func @transform_0(%arg0: i32) -> (i32, i32) {
    %c0_i32 = arith.constant 0 : i32
    %c0_i32_0 = arith.constant 0 : i32
    return %arg0, %c0_i32 : i32, i32
  }
  func.func @transform_1(%arg0: i32) -> (i32, i32) {
    %c0_i32 = arith.constant 0 : i32
    %c0_i32_0 = arith.constant 0 : i32
    %c0_i32_1 = arith.constant 0 : i32
    return %c0_i32, %c0_i32_0 : i32, i32
  }
  func.func @transform_2(%arg0: i32) -> (i32, i32) {
    %c0_i32 = arith.constant 0 : i32
    %c0_i32_0 = arith.constant 0 : i32
    %c0_i32_1 = arith.constant 0 : i32
    return %c0_i32, %c0_i32_0 : i32, i32
  }
  func.func @transform_3(%arg0: i32) -> (i32, i32) {
    %c0_i32 = arith.constant 0 : i32
    %c0_i32_0 = arith.constant 0 : i32
    %c0_i32_1 = arith.constant 0 : i32
    return %c0_i32, %c0_i32_0 : i32, i32
  }
  func.func @transform_4(%arg0: i32) -> (i32, i32) {
    %c0_i32 = arith.constant 0 : i32
    %c0_i32_0 = arith.constant 0 : i32
    %c0_i32_1 = arith.constant 0 : i32
    return %c0_i32, %c0_i32_0 : i32, i32
  }
  func.func @transform_5(%arg0: i32) -> (i32, i32) {
    %c0_i32 = arith.constant 0 : i32
    %c0_i32_0 = arith.constant 0 : i32
    %c0_i32_1 = arith.constant 0 : i32
    return %c0_i32, %c0_i32_0 : i32, i32
  }
  func.func @transform_6(%arg0: i32) -> (i32, i32) {
    %c0_i32 = arith.constant 0 : i32
    %c0_i32_0 = arith.constant 0 : i32
    %c0_i32_1 = arith.constant 0 : i32
    return %c0_i32, %c0_i32_0 : i32, i32
  }
  func.func @transform_7(%arg0: i32) -> (i32, i32) {
    %c0_i32 = arith.constant 0 : i32
    %c0_i32_0 = arith.constant 0 : i32
    %c0_i32_1 = arith.constant 0 : i32
    return %c0_i32, %c0_i32_0 : i32, i32
  }
  func.func @transform_8(%arg0: i32) -> (i32, i32) {
    %c0_i32 = arith.constant 0 : i32
    %c0_i32_0 = arith.constant 0 : i32
    %c0_i32_1 = arith.constant 0 : i32
    return %c0_i32, %c0_i32_0 : i32, i32
  }
  func.func @transform_9(%arg0: i32) -> (i32, i32) {
    %c0_i32 = arith.constant 0 : i32
    %c0_i32_0 = arith.constant 0 : i32
    return %arg0, %c0_i32 : i32, i32
  }
}

</mosaic_0001>

<llo_original>
// kernel: policy_trpo_forward.1
$region0: #{policy_trpo_forward.1}
  #allocation0 [shape = 'u32[]', space=smem, size = 0x4, offset = 0x4, fixed_abs, tag = 'smem constant byte address 0x4 - core index']
  #allocation1 [shape = 'u32[144,128]{1,0:T(1,128)}', space=vmem, size = 0x12000, scoped, tag = 'internal scratch']
  %s0 = inlined_call_operand.vmem [shape: f32[16,32], index: 0, kind: input, shape index: {}]
  %s1 = inlined_call_operand.hbm [shape: bf16[32,256], index: 1, kind: input, shape index: {}]
  %s2 = inlined_call_operand.vmem [shape: f32[1,256], index: 2, kind: input, shape index: {}]
  %s3 = inlined_call_operand.hbm [shape: bf16[256,128], index: 3, kind: input, shape index: {}]
  %s4 = inlined_call_operand.vmem [shape: f32[1,128], index: 4, kind: input, shape index: {}]
  %s5 = inlined_call_operand.hbm [shape: bf16[128,128], index: 5, kind: input, shape index: {}]
  %s6 = inlined_call_operand.vmem [shape: f32[1,128], index: 6, kind: input, shape index: {}]
  %s7 = inlined_call_operand.hbm [shape: bf16[128,128], index: 7, kind: input, shape index: {}]
  %s8 = inlined_call_operand.vmem [shape: f32[1,128], index: 8, kind: input, shape index: {}]
  %s9 = inlined_call_operand.vmem [shape: bf16[16,128], index: 9, kind: output, shape index: {}]
  %s10 = sld [smem:[#allocation0]]
  $region62: #{policy_trpo_forward.1} parent=0
    _
  %s12 = ssub.s32 1, %s10
  %s13 = scalar_select 0, %s12, %s10
  $region1: #{policy_trpo_forward.1} parent=0
    #allocation2 [shape = 'u8[16384]{0}', space=vmem, size = 0x4000, scoped, tag = 'input window, operand 1, single buffered']
    #allocation3 [shape = 's32[1]{0}', space=sflag, size = 0x4, scoped, tag = 'scoped memory for policy_trpo_forward.1']
    #allocation4 [shape = 'u8[65536]{0}', space=vmem, size = 0x10000, scoped, tag = 'input window, operand 3, single buffered']
    #allocation5 [shape = 's32[1]{0}', space=sflag, size = 0x4, scoped, tag = 'scoped memory for policy_trpo_forward.1']
    #allocation6 [shape = 'u8[32768]{0}', space=vmem, size = 0x8000, scoped, tag = 'input window, operand 5, single buffered']
    #allocation7 [shape = 'u8[32768]{0}', space=vmem, size = 0x8000, scoped, tag = 'input window, operand 7, single buffered']
    #allocation8 [shape = 's32[1]{0}', space=sflag, size = 0x4, scoped, tag = 'scoped memory for policy_trpo_forward.1']
    %14 = vsyncpa [#allocation3], 0
    %15 = vsyncpa [#allocation5], 0
    %16 = vsyncpa [#allocation8], 0
    // Predicated region
    $region2: #{policy_trpo_forward.1} parent=1 // pred_check
      _
    $region3: #{policy_trpo_forward.1} parent=1 // pred_check_branch
      %18 = sbr.rel (0) target = $region5
    $region4: #{policy_trpo_forward.1} parent=1 // pred_region
      _
    $region5: #{policy_trpo_forward.1} parent=1 // pred_fallthru
      _
    // Predicated region
    $region6: #{policy_trpo_forward.1} parent=1 // pred_check
      _
    $region7: #{policy_trpo_forward.1} parent=1 // pred_check_branch
      %20 = sbr.rel (0) target = $region9
    $region8: #{policy_trpo_forward.1} parent=1 // pred_region
      %s22 = ssub.s32 512, 512
      %23 = vsyncadd [#allocation3], %s22
      %s24 = sshll.u32 [#allocation2], 4
      %s25 = int_to_ptr.vmem [resolvable:$true] %s24
      %30 = dma.hbm_to_vmem [thread:$0]  %s1, 512, %s25, [#allocation3], 128, 128, 8
    $region9: #{policy_trpo_forward.1} parent=1 // pred_fallthru
      _
    // Predicated region
    $region10: #{policy_trpo_forward.1} parent=1 // pred_check
      _
    $region11: #{policy_trpo_forward.1} parent=1 // pred_check_branch
      %32 = sbr.rel (0) target = $region13
    $region12: #{policy_trpo_forward.1} parent=1 // pred_region
      _
    $region13: #{policy_trpo_forward.1} parent=1 // pred_fallthru
      _
    // Predicated region
    $region14: #{policy_trpo_forward.1} parent=1 // pred_check
      _
    $region15: #{policy_trpo_forward.1} parent=1 // pred_check_branch
      %34 = sbr.rel (0) target = $region17
    $region16: #{policy_trpo_forward.1} parent=1 // pred_region
      %s36 = ssub.s32 2048, 2048
      %37 = vsyncadd [#allocation5], %s36
      %s38 = sshll.u32 [#allocation4], 4
      %s39 = int_to_ptr.vmem [resolvable:$true] %s38
      %44 = dma.hbm_to_vmem [thread:$0]  %s3, 2048, %s39, [#allocation5], 64, 64, 4
    $region17: #{policy_trpo_forward.1} parent=1 // pred_fallthru
      _
    // Predicated region
    $region18: #{policy_trpo_forward.1} parent=1 // pred_check
      _
    $region19: #{policy_trpo_forward.1} parent=1 // pred_check_branch
      %46 = sbr.rel (0) target = $region21
    $region20: #{policy_trpo_forward.1} parent=1 // pred_region
      _
    $region21: #{policy_trpo_forward.1} parent=1 // pred_fallthru
      _
    // Predicated region
    $region22: #{policy_trpo_forward.1} parent=1 // pred_check
      _
    $region23: #{policy_trpo_forward.1} parent=1 // pred_check_branch
      %48 = sbr.rel (0) target = $region25
    $region24: #{policy_trpo_forward.1} parent=1 // pred_region
      %s50 = ssub.s32 1024, 1024
      %51 = vsyncadd [#allocation5], %s50
      %s52 = sshll.u32 [#allocation6], 4
      %s53 = int_to_ptr.vmem [resolvable:$true] %s52
      %58 = dma.hbm_to_vmem [thread:$0]  %s5, 1024, %s53, [#allocation5], 64, 64, 4
    $region25: #{policy_trpo_forward.1} parent=1 // pred_fallthru
      _
    // Predicated region
    $region26: #{policy_trpo_forward.1} parent=1 // pred_check
      _
    $region27: #{policy_trpo_forward.1} parent=1 // pred_check_branch
      %60 = sbr.rel (0) target = $region29
    $region28: #{policy_trpo_forward.1} parent=1 // pred_region
      _
    $region29: #{policy_trpo_forward.1} parent=1 // pred_fallthru
      _
    // Predicated region
    $region30: #{policy_trpo_forward.1} parent=1 // pred_check
      _
    $region31: #{policy_trpo_forward.1} parent=1 // pred_check_branch
      %62 = sbr.rel (0) target = $region33
    $region32: #{policy_trpo_forward.1} parent=1 // pred_region
      %s64 = ssub.s32 1024, 1024
      %65 = vsyncadd [#allocation8], %s64
      %s66 = sshll.u32 [#allocation7], 4
      %s67 = int_to_ptr.vmem [resolvable:$true] %s66
      %72 = dma.hbm_to_vmem [thread:$0]  %s7, 1024, %s67, [#allocation8], 64, 64, 4
    $region33: #{policy_trpo_forward.1} parent=1 // pred_fallthru
      _
    // Predicated region
    $region34: #{policy_trpo_forward.1} parent=1 // pred_check
      _
    $region35: #{policy_trpo_forward.1} parent=1 // pred_check_branch
      %74 = sbr.rel (0) target = $region37
    $region36: #{policy_trpo_forward.1} parent=1 // pred_region
      _
    $region37: #{policy_trpo_forward.1} parent=1 // pred_fallthru
      _
    // Predicated region
    $region38: #{policy_trpo_forward.1} parent=1 // pred_check
      _
    $region39: #{policy_trpo_forward.1} parent=1 // pred_check_branch
      %76 = sbr.rel (0) target = $region41
    $region40: #{policy_trpo_forward.1} parent=1 // pred_region
      %77 = dma.done [#allocation3], 512
    $region41: #{policy_trpo_forward.1} parent=1 // pred_fallthru
      _
    // Predicated region
    $region42: #{policy_trpo_forward.1} parent=1 // pred_check
      _
    $region43: #{policy_trpo_forward.1} parent=1 // pred_check_branch
      %79 = sbr.rel (0) target = $region45
    $region44: #{policy_trpo_forward.1} parent=1 // pred_region
      %80 = dma.done [#allocation5], 2048
    $region45: #{policy_trpo_forward.1} parent=1 // pred_fallthru
      _
    // Predicated region
    $region46: #{policy_trpo_forward.1} parent=1 // pred_check
      _
    $region47: #{policy_trpo_forward.1} parent=1 // pred_check_branch
      %82 = sbr.rel (0) target = $region49
    $region48: #{policy_trpo_forward.1} parent=1 // pred_region
      %83 = dma.done [#allocation5], 1024
    $region49: #{policy_trpo_forward.1} parent=1 // pred_fallthru
      _
    // Predicated region
    $region50: #{policy_trpo_forward.1} parent=1 // pred_check
      _
    $region51: #{policy_trpo_forward.1} parent=1 // pred_check_branch
      %85 = sbr.rel (0) target = $region53
    $region52: #{policy_trpo_forward.1} parent=1 // pred_region
      %86 = dma.done [#allocation8], 1024
    $region53: #{policy_trpo_forward.1} parent=1 // pred_fallthru
      _
    %v88 = vld [vmem:[%s0] sm:$0xff]
    %v89 = vld [vmem:[%s0 + $0x8] sm:$0xff]
    %v90 = vpack.c.bf16 %v89, %v88
    %v91 = vld [vmem:[#allocation2] sm:$0xff]
    %v92 = vld [vmem:[#allocation2 + $0x8] sm:$0xff]
    %v93 = vld [vmem:[#allocation2 + $0x10] sm:$0xff]
    %v94 = vld [vmem:[#allocation2 + $0x18] sm:$0xff]
    %v95 = vld [vmem:[%s2] sm:$0x3]
    %v97 = vlaneseq
    %v98 = vshrl.u32 %v97, 7
    %v99 = vsub.s32 0, %v98
    %v100 = vrot.slane %v95, %v99
    %v101 = vlaneseq
    %v102 = vshrl.u32 %v101, 7
    %v103 = vsub.s32 1, %v102
    %v104 = vrot.slane %v95, %v103
    %v111 = vunpack.c.l.b16 %v91
    %v112 = vunpack.c.h.b16 %v91
    %v113 = vunpack.c.l.b16 %v92
    %v114 = vunpack.c.h.b16 %v92
    %v115 = vunpack.c.l.b16 %v93
    %v116 = vunpack.c.h.b16 %v93
    %v117 = vunpack.c.l.b16 %v94
    %v118 = vunpack.c.h.b16 %v94
    %v119 = vpack.c.b16 %v113, %v111
    %v120 = vpack.c.b16 %v114, %v112
    %v121 = vpack.c.b16 %v117, %v115
    %v122 = vpack.c.b16 %v118, %v116
    %vm127 = vcmask 261120
    %v129 = vsel %vm127, %v90, 0
    %131 = vmatprep.subr.bf16.mxu0 %v120
    %132 = vmatpush1.bf16.msra.mxu0 %v119
    %133 = vmatprep.subr.bf16.mxu0 %v122
    %134 = vmatpush1.bf16.msra.mxu0 %v121
    %135 = vmatprep.subr.bf16.mxu0 0
    %136 = vmatpush1.bf16.msra.mxu0 0
    %137 = vmatprep.subr.bf16.mxu0 0
    %138 = vmatpush1.bf16.msra.mxu0 0
    %139 = vmatprep.subr.bf16.mxu0 0
    %140 = vmatpush1.bf16.msra.mxu0 0
    %141 = vmatprep.subr.bf16.mxu0 0
    %142 = vmatpush1.bf16.msra.mxu0 0
    %143 = vmatprep.subr.bf16.mxu0 0
    %144 = vmatpush1.bf16.msra.mxu0 0
    %145 = vmatprep.subr.bf16.mxu0 0
    %146 = vmatpush1.bf16.msra.mxu0 0
    %147 = vmatprep.subr.bf16.mxu0 0
    %148 = vmatpush1.bf16.msra.mxu0 0
    %149 = vmatprep.subr.bf16.mxu0 0
    %150 = vmatpush1.bf16.msra.mxu0 0
    %151 = vmatprep.subr.bf16.mxu0 0
    %152 = vmatpush1.bf16.msra.mxu0 0
    %153 = vmatprep.subr.bf16.mxu0 0
    %154 = vmatpush1.bf16.msra.mxu0 0
    %155 = vmatprep.subr.bf16.mxu0 0
    %156 = vmatpush1.bf16.msra.mxu0 0
    %157 = vmatprep.subr.bf16.mxu0 0
    %158 = vmatpush1.bf16.msra.mxu0 0
    %159 = vmatprep.subr.bf16.mxu0 0
    %160 = vmatpush1.bf16.msra.mxu0 0
    %161 = vmatprep.subr.bf16.mxu0 0
    %162 = vmatpush1.bf16.msra.mxu0 0
    %163 = vmatprep.mubr.bf16.mxu0 0
    %164 = vmatmul.mubr.bf16.gmra.mrb[0].mxu0 %v129
    %v165 = vpop.f32.mrb[0].mxu0
    %v166 = vadd.f32 %v100, %v165
    %v167 = vpop.f32.mrb[0].mxu0
    %v168 = vadd.f32 %v104, %v167
    %v169 = vpop.f32.mrb[0].mxu0
    %v170 = vadd.f32 %v100, %v169
    %v171 = vpop.f32.mrb[0].mxu0
    %v172 = vadd.f32 %v104, %v171
    %173 = vdwg.mxu0
    %v174 = vmax.f32 %v166, 0.0
    %v175 = vmax.f32 %v168, 0.0
    %v176 = vmax.f32 %v170, 0.0
    %v177 = vmax.f32 %v172, 0.0
    %v178 = vpack.c.bf16 %v176, %v174
    %v179 = vpack.c.bf16 %v177, %v175
    %v180 = vld [vmem:[#allocation4] sm:$0xf]
    %v181 = vld [vmem:[#allocation4 + $0x4] sm:$0xf]
    %v182 = vld [vmem:[#allocation4 + $0x8] sm:$0xf]
    %v183 = vld [vmem:[#allocation4 + $0xc] sm:$0xf]
    %v184 = vld [vmem:[#allocation4 + $0x10] sm:$0xf]
    %v185 = vld [vmem:[#allocation4 + $0x14] sm:$0xf]
    %v186 = vld [vmem:[#allocation4 + $0x18] sm:$0xf]
    %v187 = vld [vmem:[#allocation4 + $0x1c] sm:$0xf]
    %v188 = vld [vmem:[#allocation4 + $0x20] sm:$0xf]
    %v189 = vld [vmem:[#allocation4 + $0x24] sm:$0xf]
    %v190 = vld [vmem:[#allocation4 + $0x28] sm:$0xf]
    %v191 = vld [vmem:[#allocation4 + $0x2c] sm:$0xf]
    %v192 = vld [vmem:[#allocation4 + $0x30] sm:$0xf]
    %v193 = vld [vmem:[#allocation4 + $0x34] sm:$0xf]
    %v194 = vld [vmem:[#allocation4 + $0x38] sm:$0xf]
    %v195 = vld [vmem:[#allocation4 + $0x3c] sm:$0xf]
    %v196 = vld [vmem:[#allocation4 + $0x40] sm:$0xf]
    %v197 = vld [vmem:[#allocation4 + $0x44] sm:$0xf]
    %v198 = vld [vmem:[#allocation4 + $0x48] sm:$0xf]
    %v199 = vld [vmem:[#allocation4 + $0x4c] sm:$0xf]
    %v200 = vld [vmem:[#allocation4 + $0x50] sm:$0xf]
    %v201 = vld [vmem:[#allocation4 + $0x54] sm:$0xf]
    %v202 = vld [vmem:[#allocation4 + $0x58] sm:$0xf]
    %v203 = vld [vmem:[#allocation4 + $0x5c] sm:$0xf]
    %v204 = vld [vmem:[#allocation4 + $0x60] sm:$0xf]
    %v205 = vld [vmem:[#allocation4 + $0x64] sm:$0xf]
    %v206 = vld [vmem:[#allocation4 + $0x68] sm:$0xf]
    %v207 = vld [vmem:[#allocation4 + $0x6c] sm:$0xf]
    %v208 = vld [vmem:[#allocation4 + $0x70] sm:$0xf]
    %v209 = vld [vmem:[#allocation4 + $0x74] sm:$0xf]
    %v210 = vld [vmem:[#allocation4 + $0x78] sm:$0xf]
    %v211 = vld [vmem:[#allocation4 + $0x7c] sm:$0xf]
    %v212 = vld [vmem:[%s4] sm:$0x1]
    %v214 = vlaneseq
    %v215 = vshrl.u32 %v214, 7
    %v216 = vsub.s32 0, %v215
    %v217 = vrot.slane %v212, %v216
    %v251 = vunpack.c.l.b16 %v180
    %v252 = vunpack.c.l.b16 %v181
    %v253 = vunpack.c.l.b16 %v182
    %v254 = vunpack.c.l.b16 %v183
    %v255 = vunpack.c.l.b16 %v184
    %v256 = vunpack.c.l.b16 %v185
    %v257 = vunpack.c.l.b16 %v186
    %v258 = vunpack.c.l.b16 %v187
    %v259 = vunpack.c.l.b16 %v188
    %v260 = vunpack.c.l.b16 %v189
    %v261 = vunpack.c.l.b16 %v190
    %v262 = vunpack.c.l.b16 %v191
    %v263 = vunpack.c.l.b16 %v192
    %v264 = vunpack.c.l.b16 %v193
    %v265 = vunpack.c.l.b16 %v194
    %v266 = vunpack.c.l.b16 %v195
    %v267 = vunpack.c.l.b16 %v196
    %v268 = vunpack.c.l.b16 %v197
    %v269 = vunpack.c.l.b16 %v198
    %v270 = vunpack.c.l.b16 %v199
    %v271 = vunpack.c.l.b16 %v200
    %v272 = vunpack.c.l.b16 %v201
    %v273 = vunpack.c.l.b16 %v202
    %v274 = vunpack.c.l.b16 %v203
    %v275 = vunpack.c.l.b16 %v204
    %v276 = vunpack.c.l.b16 %v205
    %v277 = vunpack.c.l.b16 %v206
    %v278 = vunpack.c.l.b16 %v207
    %v279 = vunpack.c.l.b16 %v208
    %v280 = vunpack.c.l.b16 %v209
    %v281 = vunpack.c.l.b16 %v210
    %v282 = vunpack.c.l.b16 %v211
    %v283 = vpack.c.b16 %v252, %v251
    %v284 = vpack.c.b16 %v254, %v253
    %v285 = vpack.c.b16 %v256, %v255
    %v286 = vpack.c.b16 %v258, %v257
    %v287 = vpack.c.b16 %v260, %v259
    %v288 = vpack.c.b16 %v262, %v261
    %v289 = vpack.c.b16 %v264, %v263
    %v290 = vpack.c.b16 %v266, %v265
    %v291 = vpack.c.b16 %v268, %v267
    %v292 = vpack.c.b16 %v270, %v269
    %v293 = vpack.c.b16 %v272, %v271
    %v294 = vpack.c.b16 %v274, %v273
    %v295 = vpack.c.b16 %v276, %v275
    %v296 = vpack.c.b16 %v278, %v277
    %v297 = vpack.c.b16 %v280, %v279
    %v298 = vpack.c.b16 %v282, %v281
    %315 = vmatprep.subr.bf16.mxu0 0
    %316 = vmatpush1.bf16.msra.mxu0 %v283
    %317 = vmatprep.subr.bf16.mxu0 0
    %318 = vmatpush1.bf16.msra.mxu0 %v284
    %319 = vmatprep.subr.bf16.mxu0 0
    %320 = vmatpush1.bf16.msra.mxu0 %v285
    %321 = vmatprep.subr.bf16.mxu0 0
    %322 = vmatpush1.bf16.msra.mxu0 %v286
    %323 = vmatprep.subr.bf16.mxu0 0
    %324 = vmatpush1.bf16.msra.mxu0 %v287
    %325 = vmatprep.subr.bf16.mxu0 0
    %326 = vmatpush1.bf16.msra.mxu0 %v288
    %327 = vmatprep.subr.bf16.mxu0 0
    %328 = vmatpush1.bf16.msra.mxu0 %v289
    %329 = vmatprep.subr.bf16.mxu0 0
    %330 = vmatpush1.bf16.msra.mxu0 %v290
    %331 = vmatprep.subr.bf16.mxu0 0
    %332 = vmatpush1.bf16.msra.mxu0 %v291
    %333 = vmatprep.subr.bf16.mxu0 0
    %334 = vmatpush1.bf16.msra.mxu0 %v292
    %335 = vmatprep.subr.bf16.mxu0 0
    %336 = vmatpush1.bf16.msra.mxu0 %v293
    %337 = vmatprep.subr.bf16.mxu0 0
    %338 = vmatpush1.bf16.msra.mxu0 %v294
    %339 = vmatprep.subr.bf16.mxu0 0
    %340 = vmatpush1.bf16.msra.mxu0 %v295
    %341 = vmatprep.subr.bf16.mxu0 0
    %342 = vmatpush1.bf16.msra.mxu0 %v296
    %343 = vmatprep.subr.bf16.mxu0 0
    %344 = vmatpush1.bf16.msra.mxu0 %v297
    %345 = vmatprep.subr.bf16.mxu0 0
    %346 = vmatpush1.bf16.msra.mxu0 %v298
    %347 = vmatprep.mubr.bf16.mxu0 %v179
    %348 = vmatmul.mubr.bf16.gmra.mrb[0].mxu0 %v178
    %v349 = vpop.f32.mrb[0].mxu0
    %v350 = vadd.f32 %v217, %v349
    %v351 = vpop.f32.mrb[0].mxu0
    %v352 = vpop.f32.mrb[0].mxu0
    %v353 = vadd.f32 %v217, %v352
    %v354 = vpop.f32.mrb[0].mxu0
    %355 = vdwg.mxu0
    %v356 = vmax.f32 %v350, 0.0
    %v357 = vmax.f32 %v353, 0.0
    %v358 = vpack.c.bf16 %v357, %v356
    %v359 = vld [vmem:[#allocation6] sm:$0xf]
    %v360 = vld [vmem:[#allocation6 + $0x4] sm:$0xf]
    %v361 = vld [vmem:[#allocation6 + $0x8] sm:$0xf]
    %v362 = vld [vmem:[#allocation6 + $0xc] sm:$0xf]
    %v363 = vld [vmem:[#allocation6 + $0x10] sm:$0xf]
    %v364 = vld [vmem:[#allocation6 + $0x14] sm:$0xf]
    %v365 = vld [vmem:[#allocation6 + $0x18] sm:$0xf]
    %v366 = vld [vmem:[#allocation6 + $0x1c] sm:$0xf]
    %v367 = vld [vmem:[#allocation6 + $0x20] sm:$0xf]
    %v368 = vld [vmem:[#allocation6 + $0x24] sm:$0xf]
    %v369 = vld [vmem:[#allocation6 + $0x28] sm:$0xf]
    %v370 = vld [vmem:[#allocation6 + $0x2c] sm:$0xf]
    %v371 = vld [vmem:[#allocation6 + $0x30] sm:$0xf]
    %v372 = vld [vmem:[#allocation6 + $0x34] sm:$0xf]
    %v373 = vld [vmem:[#allocation6 + $0x38] sm:$0xf]
    %v374 = vld [vmem:[#allocation6 + $0x3c] sm:$0xf]
    %v375 = vld [vmem:[%s6] sm:$0x1]
    %v377 = vlaneseq
    %v378 = vshrl.u32 %v377, 7
    %v379 = vsub.s32 0, %v378
    %v380 = vrot.slane %v375, %v379
    %v398 = vunpack.c.l.b16 %v359
    %v399 = vunpack.c.l.b16 %v360
    %v400 = vunpack.c.l.b16 %v361
    %v401 = vunpack.c.l.b16 %v362
    %v402 = vunpack.c.l.b16 %v363
    %v403 = vunpack.c.l.b16 %v364
    %v404 = vunpack.c.l.b16 %v365
    %v405 = vunpack.c.l.b16 %v366
    %v406 = vunpack.c.l.b16 %v367
    %v407 = vunpack.c.l.b16 %v368
    %v408 = vunpack.c.l.b16 %v369
    %v409 = vunpack.c.l.b16 %v370
    %v410 = vunpack.c.l.b16 %v371
    %v411 = vunpack.c.l.b16 %v372
    %v412 = vunpack.c.l.b16 %v373
    %v413 = vunpack.c.l.b16 %v374
    %v414 = vpack.c.b16 %v399, %v398
    %v415 = vpack.c.b16 %v401, %v400
    %v416 = vpack.c.b16 %v403, %v402
    %v417 = vpack.c.b16 %v405, %v404
    %v418 = vpack.c.b16 %v407, %v406
    %v419 = vpack.c.b16 %v409, %v408
    %v420 = vpack.c.b16 %v411, %v410
    %v421 = vpack.c.b16 %v413, %v412
    %430 = vmatprep.subr.bf16.mxu0 0
    %431 = vmatpush1.bf16.msra.mxu0 %v414
    %432 = vmatprep.subr.bf16.mxu0 0
    %433 = vmatpush1.bf16.msra.mxu0 %v415
    %434 = vmatprep.subr.bf16.mxu0 0
    %435 = vmatpush1.bf16.msra.mxu0 %v416
    %436 = vmatprep.subr.bf16.mxu0 0
    %437 = vmatpush1.bf16.msra.mxu0 %v417
    %438 = vmatprep.subr.bf16.mxu0 0
    %439 = vmatpush1.bf16.msra.mxu0 %v418
    %440 = vmatprep.subr.bf16.mxu0 0
    %441 = vmatpush1.bf16.msra.mxu0 %v419
    %442 = vmatprep.subr.bf16.mxu0 0
    %443 = vmatpush1.bf16.msra.mxu0 %v420
    %444 = vmatprep.subr.bf16.mxu0 0
    %445 = vmatpush1.bf16.msra.mxu0 %v421
    %446 = vmatprep.subr.bf16.mxu0 0
    %447 = vmatpush1.bf16.msra.mxu0 0
    %448 = vmatprep.subr.bf16.mxu0 0
    %449 = vmatpush1.bf16.msra.mxu0 0
    %450 = vmatprep.subr.bf16.mxu0 0
    %451 = vmatpush1.bf16.msra.mxu0 0
    %452 = vmatprep.subr.bf16.mxu0 0
    %453 = vmatpush1.bf16.msra.mxu0 0
    %454 = vmatprep.subr.bf16.mxu0 0
    %455 = vmatpush1.bf16.msra.mxu0 0
    %456 = vmatprep.subr.bf16.mxu0 0
    %457 = vmatpush1.bf16.msra.mxu0 0
    %458 = vmatprep.subr.bf16.mxu0 0
    %459 = vmatpush1.bf16.msra.mxu0 0
    %460 = vmatprep.subr.bf16.mxu0 0
    %461 = vmatpush1.bf16.msra.mxu0 0
    %462 = vmatprep.mubr.bf16.mxu0 0
    %463 = vmatmul.mubr.bf16.gmra.mrb[0].mxu0 %v358
    %v464 = vpop.f32.mrb[0].mxu0
    %v465 = vadd.f32 %v380, %v464
    %v466 = vpop.f32.mrb[0].mxu0
    %v467 = vpop.f32.mrb[0].mxu0
    %v468 = vadd.f32 %v380, %v467
    %v469 = vpop.f32.mrb[0].mxu0
    %470 = vdwg.mxu0
    %v471 = vmax.f32 %v465, 0.0
    %v472 = vmax.f32 %v468, 0.0
    %v473 = vpack.c.bf16 %v472, %v471
    %v474 = vld [vmem:[#allocation7] sm:$0xf]
    %v475 = vld [vmem:[#allocation7 + $0x4] sm:$0xf]
    %v476 = vld [vmem:[#allocation7 + $0x8] sm:$0xf]
    %v477 = vld [vmem:[#allocation7 + $0xc] sm:$0xf]
    %v478 = vld [vmem:[#allocation7 + $0x10] sm:$0xf]
    %v479 = vld [vmem:[#allocation7 + $0x14] sm:$0xf]
    %v480 = vld [vmem:[#allocation7 + $0x18] sm:$0xf]
    %v481 = vld [vmem:[#allocation7 + $0x1c] sm:$0xf]
    %v482 = vld [vmem:[#allocation7 + $0x20] sm:$0xf]
    %v483 = vld [vmem:[#allocation7 + $0x24] sm:$0xf]
    %v484 = vld [vmem:[#allocation7 + $0x28] sm:$0xf]
    %v485 = vld [vmem:[#allocation7 + $0x2c] sm:$0xf]
    %v486 = vld [vmem:[#allocation7 + $0x30] sm:$0xf]
    %v487 = vld [vmem:[#allocation7 + $0x34] sm:$0xf]
    %v488 = vld [vmem:[#allocation7 + $0x38] sm:$0xf]
    %v489 = vld [vmem:[#allocation7 + $0x3c] sm:$0xf]
    %v490 = vld [vmem:[%s8] sm:$0x1]
    %v492 = vlaneseq
    %v493 = vshrl.u32 %v492, 7
    %v494 = vsub.s32 0, %v493
    %v495 = vrot.slane %v490, %v494
    %v513 = vunpack.c.l.b16 %v474
    %v514 = vunpack.c.l.b16 %v475
    %v515 = vunpack.c.l.b16 %v476
    %v516 = vunpack.c.l.b16 %v477
    %v517 = vunpack.c.l.b16 %v478
    %v518 = vunpack.c.l.b16 %v479
    %v519 = vunpack.c.l.b16 %v480
    %v520 = vunpack.c.l.b16 %v481
    %v521 = vunpack.c.l.b16 %v482
    %v522 = vunpack.c.l.b16 %v483
    %v523 = vunpack.c.l.b16 %v484
    %v524 = vunpack.c.l.b16 %v485
    %v525 = vunpack.c.l.b16 %v486
    %v526 = vunpack.c.l.b16 %v487
    %v527 = vunpack.c.l.b16 %v488
    %v528 = vunpack.c.l.b16 %v489
    %v529 = vpack.c.b16 %v514, %v513
    %v530 = vpack.c.b16 %v516, %v515
    %v531 = vpack.c.b16 %v518, %v517
    %v532 = vpack.c.b16 %v520, %v519
    %v533 = vpack.c.b16 %v522, %v521
    %v534 = vpack.c.b16 %v524, %v523
    %v535 = vpack.c.b16 %v526, %v525
    %v536 = vpack.c.b16 %v528, %v527
    %545 = vmatprep.subr.bf16.mxu0 0
    %546 = vmatpush1.bf16.msra.mxu0 %v529
    %547 = vmatprep.subr.bf16.mxu0 0
    %548 = vmatpush1.bf16.msra.mxu0 %v530
    %549 = vmatprep.subr.bf16.mxu0 0
    %550 = vmatpush1.bf16.msra.mxu0 %v531
    %551 = vmatprep.subr.bf16.mxu0 0
    %552 = vmatpush1.bf16.msra.mxu0 %v532
    %553 = vmatprep.subr.bf16.mxu0 0
    %554 = vmatpush1.bf16.msra.mxu0 %v533
    %555 = vmatprep.subr.bf16.mxu0 0
    %556 = vmatpush1.bf16.msra.mxu0 %v534
    %557 = vmatprep.subr.bf16.mxu0 0
    %558 = vmatpush1.bf16.msra.mxu0 %v535
    %559 = vmatprep.subr.bf16.mxu0 0
    %560 = vmatpush1.bf16.msra.mxu0 %v536
    %561 = vmatprep.subr.bf16.mxu0 0
    %562 = vmatpush1.bf16.msra.mxu0 0
    %563 = vmatprep.subr.bf16.mxu0 0
    %564 = vmatpush1.bf16.msra.mxu0 0
    %565 = vmatprep.subr.bf16.mxu0 0
    %566 = vmatpush1.bf16.msra.mxu0 0
    %567 = vmatprep.subr.bf16.mxu0 0
    %568 = vmatpush1.bf16.msra.mxu0 0
    %569 = vmatprep.subr.bf16.mxu0 0
    %570 = vmatpush1.bf16.msra.mxu0 0
    %571 = vmatprep.subr.bf16.mxu0 0
    %572 = vmatpush1.bf16.msra.mxu0 0
    %573 = vmatprep.subr.bf16.mxu0 0
    %574 = vmatpush1.bf16.msra.mxu0 0
    %575 = vmatprep.subr.bf16.mxu0 0
    %576 = vmatpush1.bf16.msra.mxu0 0
    %577 = vmatprep.mubr.bf16.mxu0 0
    %578 = vmatmul.mubr.bf16.gmra.mrb[0].mxu0 %v473
    %v579 = vpop.f32.mrb[0].mxu0
    %v580 = vadd.f32 %v495, %v579
    %v581 = vpop.f32.mrb[0].mxu0
    %v582 = vpop.f32.mrb[0].mxu0
    %v583 = vadd.f32 %v495, %v582
    %v584 = vpop.f32.mrb[0].mxu0
    %585 = vdwg.mxu0
    %v586 = vlaneseq
    %v587 = vand.u32 %v586, 127
    %vm588 = vcmp.lt.s32.totalorder %v587, 8
    %vm589 = vcmp.ge.s32.totalorder %v587, 8
    %vm590 = vcmp.lt.s32.totalorder %v587, 16
    %vm591 = vmand %vm589, %vm590
    %v592 = vsel %vm591, %v580, -inf
    %v593 = vsel %vm591, %v583, -inf
    %594 = vmax.xlane.f32.xlu0 %v592
    %v595 = vpop.xlane.xlu0 %594
    %596 = vmax.xlane.f32.xlu0 %v593
    %v597 = vpop.xlane.xlu0 %596
    %v598 = vmul.f32 %v580, 2.0
    %v599 = vmul.f32 %v583, 2.0
    %v600 = vsub.f32 %v580, %v595
    %v601 = vsub.f32 %v583, %v597
    %v602 = vsel %vm591, %v600, -inf
    %v603 = vsel %vm591, %v601, -inf
    %v604 = vsel %vm588, %v598, %v602
    %v605 = vsel %vm588, %v599, %v603
    %v606 = vmul.f32 %v604, 1.442695
    %v607 = vpow.pop %v606
    %v608 = vmul.f32 %v605, 1.442695
    %v609 = vpow.pop %v608
    %v610 = vadd.f32 %v607, 1.0
    %v611 = vadd.f32 %v609, 1.0
    %v612 = vrcp.pop %v610
    %v613 = vrcp.pop %v611
    %v614 = vmul.f32 %v612, 2.0
    %v615 = vmul.f32 %v613, 2.0
    %v616 = vsub.f32 1.0, %v614
    %v617 = vsub.f32 1.0, %v615
    %v618 = vmax.f32 %v616, -1.0
    %v619 = vmax.f32 %v617, -1.0
    %v620 = vmin.f32 %v618, 1.0
    %v621 = vmin.f32 %v619, 1.0
    %v622 = vsel %vm591, %v607, 0.0
    %v623 = vsel %vm591, %v609, 0.0
    %624 = vadd.xlane.f32.xlu0 %v622
    %v625 = vpop.xlane.xlu0 %624
    %626 = vadd.xlane.f32.xlu0 %v623
    %v627 = vpop.xlane.xlu0 %626
    %v628 = vrcp.pop %v625
    %v629 = vrcp.pop %v627
    %v630 = vmul.f32 %v607, %v628
    %v631 = vmul.f32 %v609, %v629
    %v632 = vsel %vm588, %v620, %v630
    %v633 = vsel %vm588, %v621, %v631
    %v634 = vpack.c.bf16 %v633, %v632
    %v636 = vunpack.c.l.b16 %v634
    %v637 = vunpack.c.h.b16 %v634
    %v638 = vpack.c.b16 %v636, %v636
    %v639 = vpack.c.b16 %v637, %v637
    %642 = vst [vmem:[%s9] sm:$0xf] %v638
    %643 = vst [vmem:[%s9 + $0x4] sm:$0xf] %v639
    // Predicated region
    $region54: #{policy_trpo_forward.1} parent=1 // pred_check
      _
    $region55: #{policy_trpo_forward.1} parent=1 // pred_check_branch
      %645 = sbr.rel (0) target = $region57
    $region56: #{policy_trpo_forward.1} parent=1 // pred_region
      _
    $region57: #{policy_trpo_forward.1} parent=1 // pred_fallthru
      _
    // Predicated region
    $region58: #{policy_trpo_forward.1} parent=1 // pred_check
      _
    $region59: #{policy_trpo_forward.1} parent=1 // pred_check_branch
      %647 = sbr.rel (0) target = $region61
    $region60: #{policy_trpo_forward.1} parent=1 // pred_region
      _
    $region61: #{policy_trpo_forward.1} parent=1 // pred_fallthru
      _
    %648 = vsyncpa [#allocation3], 1
    %649 = vsyncpa [#allocation5], 1
    %650 = vsyncpa [#allocation8], 1

</llo_original>
